<compile_context>
chip_gen: v7x
topology: tpu7x:2x2x1
jax: 0.10.0
libtpu: 0.0.40
codegen_flags: <defaults>
</compile_context>

<pallas_src>
import jax
import jax.numpy as jnp
from jax.experimental import pallas as pl
from jax.experimental.pallas import tpu as pltpu


def _round_up(v, m):
    return -(-v // m) * m


def _hardsig_linear_kernel(b_ref, x_ref, w_ref, o_ref):
    # b_ref: SMEM (1, 1) f32 holding (bias + 3) / 6   (bias, "+3" and "/6" folded in)
    # x_ref: VMEM (TB, F) block of input rows
    # w_ref: VMEM (F, 1)  pre-scaled weight column (weight / 6), resident across steps
    # o_ref: VMEM (TB, 1) output block
    acc = jnp.dot(x_ref[...], w_ref[...], preferred_element_type=jnp.float32)  # (TB, 1) via MXU
    v = acc + b_ref[0, 0]                              # single scalar add (bias + 3)/6
    o_ref[...] = jnp.minimum(jnp.maximum(v, 0.0), 1.0)  # clamp(v,0,6)/6 == clamp(v/6,0,1)


def mod_forward(x, weight, bias, *, max_block_rows=8192):
    """hardsigmoid-style(Linear(x)).  x: (B, F) f32, weight: (1, F) (PyTorch layout), bias: (1,)."""
    B, F = x.shape
    assert weight.shape == (1, F) and bias.shape == (1,)

    # Adaptive batch tile: as large as possible (<= 8192 rows, multiple of 8)
    # so per-grid-step overhead (~0.35 us) is amortized over MiB-scale DMA.
    r8 = _round_up(B, 8)
    n_blocks = -(-r8 // max_block_rows)
    if r8 >= 16:
        n_blocks = max(n_blocks, 2)  # v7x: >= 2 grid steps so both TensorCores get work
    tb = _round_up(-(-r8 // n_blocks), 8)
    grid = -(-B // tb)               # ragged last block handled by Pallas (tail writes discarded)

    # Fold the "+3" and the "/6" of the hardsigmoid into the parameters once.
    w_col = (weight.astype(jnp.float32) * (1.0 / 6.0)).T          # (F, 1)
    b_scalar = ((bias.astype(jnp.float32) + 3.0) * (1.0 / 6.0)).reshape(1, 1)

    return pl.pallas_call(
        _hardsig_linear_kernel,
        out_shape=jax.ShapeDtypeStruct((B, 1), jnp.float32),
        grid=(grid,),
        in_specs=[
            pl.BlockSpec(memory_space=pltpu.MemorySpace.SMEM),     # (bias+3)/6 scalar in SMEM
            pl.BlockSpec((tb, F), lambda i: (i, 0)),               # x rows, pipelined over batch
            pl.BlockSpec((F, 1), lambda i: (0, 0)),                # weight column, stays resident
        ],
        out_specs=pl.BlockSpec((tb, 1), lambda i: (i, 0)),
        compiler_params=pltpu.CompilerParams(
            dimension_semantics=("parallel",),   # batch blocks shard across v7x's 2 TensorCores
            vmem_limit_bytes=32 * 1024 * 1024,   # explicit budget, safe on v5e/v6e/v7x
        ),
    )(b_scalar, x, w_col)


if __name__ == "__main__":
    key = jax.random.PRNGKey(0)
    kx, kw, kb = jax.random.split(key, 3)

    B, F = 1, 35
    x = jax.random.normal(kx, (B, F), dtype=jnp.float32)

    # Deterministic parameter init mimicking nn.Linear(35, 1):
    # uniform(-1/sqrt(F), 1/sqrt(F)) for both weight and bias.
    bound = 1.0 / jnp.sqrt(jnp.float32(F))
    weight = jax.random.uniform(kw, (1, F), dtype=jnp.float32, minval=-bound, maxval=bound)
    bias = jax.random.uniform(kb, (1,), dtype=jnp.float32, minval=-bound, maxval=bound)

    def ref_fn(xx):
        return jnp.clip(xx @ weight.T + bias + 3.0, 0.0, 6.0) / 6.0

    # Spec-sized run (B = 1).
    out = jax.block_until_ready(mod_forward(x, weight, bias))
    assert out.shape == (B, 1)
    assert jnp.allclose(out, ref_fn(x), atol=1e-5, rtol=1e-5), (out, ref_fn(x))

    # Batch-tiled path: grid > 1 (both v7x TCs busy) with a ragged last block.
    B2 = 1041
    x2 = jax.random.normal(jax.random.PRNGKey(1), (B2, F), dtype=jnp.float32)
    out2 = jax.block_until_ready(mod_forward(x2, weight, bias))
    assert out2.shape == (B2, 1)
    assert jnp.allclose(out2, ref_fn(x2), atol=1e-5, rtol=1e-5)

    # Large batch: multiple max-size blocks.
    B3 = 20000
    x3 = jax.random.normal(jax.random.PRNGKey(2), (B3, F), dtype=jnp.float32)
    out3 = jax.block_until_ready(mod_forward(x3, weight, bias))
    assert out3.shape == (B3, 1)
    assert jnp.allclose(out3, ref_fn(x3), atol=1e-5, rtol=1e-5)

    print("KERNEL_OK")
</pallas_src>

<mosaic_0001>
module attributes {stable_mosaic.version = 11 : i64} {
  func.func @_hardsig_linear_kernel(%arg0: i32, %arg1: memref<1x1xf32, #tpu.memory_space<smem>>, %arg2: memref<8x35xf32, #tpu.memory_space<vmem>>, %arg3: memref<35x1xf32, #tpu.memory_space<vmem>>, %arg4: memref<8x1xf32, #tpu.memory_space<vmem>>) attributes {dimension_semantics = [#tpu.dimension_semantics<parallel>], iteration_bounds = array<i64: 1>, scalar_prefetch = 0 : i64, scratch_operands = 0 : i64, tpu.core_type = #tpu.core_type<tc>, window_params = [{transform_indices = @transform_0, window_bounds = array<i64: 1, 1>}, {transform_indices = @transform_1, window_bounds = array<i64: 8, 35>}, {pipeline_mode = #tpu.pipeline_mode<synchronous>, transform_indices = @transform_2, window_bounds = array<i64: 35, 1>}, {transform_indices = @transform_3, window_bounds = array<i64: 8, 1>}]} {
    %c0 = arith.constant 0 : index
    %c0_0 = arith.constant 0 : index
    %0 = vector.load %arg2[%c0, %c0_0] : memref<8x35xf32, #tpu.memory_space<vmem>>, vector<8x35xf32>
    %c0_1 = arith.constant 0 : index
    %c0_2 = arith.constant 0 : index
    %1 = vector.load %arg3[%c0_1, %c0_2] : memref<35x1xf32, #tpu.memory_space<vmem>>, vector<35x1xf32>
    %cst = arith.constant dense<0.000000e+00> : vector<8x1xf32>
    %2 = tpu.matmul %0, %1, %cst {dimension_numbers = #tpu.dot_dimension_numbers<[1], [0], [0], [1], [0, 0, 1, 1], [], []>} : vector<8x35xf32>, vector<35x1xf32>, vector<8x1xf32> -> vector<8x1xf32>
    %c0_3 = arith.constant 0 : index
    %c0_4 = arith.constant 0 : index
    %3 = memref.load %arg1[%c0_3, %c0_4] : memref<1x1xf32, #tpu.memory_space<smem>>
    %4 = vector.broadcast %3 : f32 to vector<8x1xf32>
    %5 = arith.addf %2, %4 : vector<8x1xf32>
    %cst_5 = arith.constant 0.000000e+00 : f32
    %6 = vector.broadcast %cst_5 : f32 to vector<8x1xf32>
    %7 = arith.maximumf %5, %6 : vector<8x1xf32>
    %cst_6 = arith.constant 1.000000e+00 : f32
    %8 = vector.broadcast %cst_6 : f32 to vector<8x1xf32>
    %9 = arith.minimumf %7, %8 : vector<8x1xf32>
    %c0_7 = arith.constant 0 : index
    %c0_8 = arith.constant 0 : index
    %10 = vector.load %arg4[%c0_7, %c0_8] : memref<8x1xf32, #tpu.memory_space<vmem>>, vector<8x1xf32>
    tpu.vector_store %arg4[%c0_7, %c0_8], %9 {strides = array<i32>} : memref<8x1xf32, #tpu.memory_space<vmem>>, vector<8x1xf32>,
    return
  }
  func.func @transform_0(%arg0: i32) -> (i32, i32) {
    %c0_i32 = arith.constant 0 : i32
    %c0_i32_0 = arith.constant 0 : i32
    %c0_i32_1 = arith.constant 0 : i32
    return %c0_i32, %c0_i32_0 : i32, i32
  }
  func.func @transform_1(%arg0: i32) -> (i32, i32) {
    %c0_i32 = arith.constant 0 : i32
    %c0_i32_0 = arith.constant 0 : i32
    return %arg0, %c0_i32 : i32, i32
  }
  func.func @transform_2(%arg0: i32) -> (i32, i32) {
    %c0_i32 = arith.constant 0 : i32
    %c0_i32_0 = arith.constant 0 : i32
    %c0_i32_1 = arith.constant 0 : i32
    return %c0_i32, %c0_i32_0 : i32, i32
  }
  func.func @transform_3(%arg0: i32) -> (i32, i32) {
    %c0_i32 = arith.constant 0 : i32
    %c0_i32_0 = arith.constant 0 : i32
    return %arg0, %c0_i32 : i32, i32
  }
}

</mosaic_0001>

<llo_original>
// kernel: tpu_custom_call.1
$region0: #{tpu_custom_call.1}
  #allocation0 [shape = 'u32[]', space=smem, size = 0x4, offset = 0x4, fixed_abs, tag = 'smem constant byte address 0x4 - core index']
  #allocation1 [shape = 'u32[144,128]{1,0:T(1,128)}', space=vmem, size = 0x12000, scoped, tag = 'internal scratch']
  #allocation2 [shape = 'f32[1,1]{1,0:T(1,128)S(6)}', space=smem, size = 0x200, scoped, tag = 'scoped memory for tpu_custom_call.1']
  %s0 = inlined_call_operand.<no memory space> [shape: f32[1,1], index: 0, kind: input, shape index: {}]
  %s1 = inlined_call_operand.vmem [shape: f32[1,35], index: 1, kind: input, shape index: {}]
  %s2 = inlined_call_operand.vmem [shape: f32[35,1], index: 2, kind: input, shape index: {}]
  %s3 = inlined_call_operand.hbm [shape: f32[1,1], index: 3, kind: output, shape index: {}]
  %s4 = sld [smem:[#allocation0]]
  $region22: #{tpu_custom_call.1} parent=0
    _
  %s6 = ssub.s32 1, %s4
  %s7 = scalar_select 0, %s6, %s4
  %8 = sst [smem:[#allocation2]] %s0
  $region1: #{tpu_custom_call.1} parent=0
    #allocation3 [shape = 'u8[4096]{0}', space=vmem, size = 0x1000, scoped, tag = 'output window, operand 0, single buffered']
    #allocation4 [shape = 's32[1]{0}', space=sflag, size = 0x4, scoped, tag = 'scoped memory for tpu_custom_call.1']
    %9 = vsyncpa [#allocation4], 0
    // Predicated region
    $region2: #{tpu_custom_call.1} parent=1 // pred_check
      _
    $region3: #{tpu_custom_call.1} parent=1 // pred_check_branch
      %11 = sbr.rel (0) target = $region5
    $region4: #{tpu_custom_call.1} parent=1 // pred_region
      _
    $region5: #{tpu_custom_call.1} parent=1 // pred_fallthru
      _
    // Predicated region
    $region6: #{tpu_custom_call.1} parent=1 // pred_check
      _
    $region7: #{tpu_custom_call.1} parent=1 // pred_check_branch
      %13 = sbr.rel (0) target = $region9
    $region8: #{tpu_custom_call.1} parent=1 // pred_region
      _
    $region9: #{tpu_custom_call.1} parent=1 // pred_fallthru
      _
    // Predicated region
    $region10: #{tpu_custom_call.1} parent=1 // pred_check
      _
    $region11: #{tpu_custom_call.1} parent=1 // pred_check_branch
      %15 = sbr.rel (0) target = $region13
    $region12: #{tpu_custom_call.1} parent=1 // pred_region
      _
    $region13: #{tpu_custom_call.1} parent=1 // pred_fallthru
      _
    %v16 = vld [vmem:[%s1] sm:$0xff]
    %v17 = vld [vmem:[%s2] sm:$0xff]
    %v18 = vld [vmem:[%s2 + $0x8] sm:$0xff]
    %v19 = vld [vmem:[%s2 + $0x10] sm:$0xff]
    %v20 = vld [vmem:[%s2 + $0x18] sm:$0xff]
    %v21 = vld [vmem:[%s2 + $0x20] sm:$0x7]
    %s22 = sld [smem:[#allocation2]]
    %v23 = vstv %s22
    %vm24 = vcmask 285696
    %v26 = vsel %vm24, %v16, 0
    %vm28 = vcmask 1042432
    %v30 = vsel %vm28, %v21, 0
    %32 = vmatprep.subr.mxu0 0.0
    %33 = vmatpush1.msra.mxu0 %v17
    %34 = vmatprep.subr.mxu0 0.0
    %35 = vmatpush1.msra.mxu0 %v18
    %36 = vmatprep.subr.mxu0 0.0
    %37 = vmatpush1.msra.mxu0 %v19
    %38 = vmatprep.subr.mxu0 0.0
    %39 = vmatpush1.msra.mxu0 %v20
    %40 = vmatprep.subr.mxu0 0.0
    %41 = vmatpush1.msra.mxu0 %v30
    %42 = vmatprep.subr.mxu0 0.0
    %43 = vmatpush1.msra.mxu0 0.0
    %44 = vmatprep.subr.mxu0 0.0
    %45 = vmatpush1.msra.mxu0 0.0
    %46 = vmatprep.subr.mxu0 0.0
    %47 = vmatpush1.msra.mxu0 0.0
    %48 = vmatprep.subr.mxu0 0.0
    %49 = vmatpush1.msra.mxu0 0.0
    %50 = vmatprep.subr.mxu0 0.0
    %51 = vmatpush1.msra.mxu0 0.0
    %52 = vmatprep.subr.mxu0 0.0
    %53 = vmatpush1.msra.mxu0 0.0
    %54 = vmatprep.subr.mxu0 0.0
    %55 = vmatpush1.msra.mxu0 0.0
    %56 = vmatprep.subr.mxu0 0.0
    %57 = vmatpush1.msra.mxu0 0.0
    %58 = vmatprep.subr.mxu0 0.0
    %59 = vmatpush1.msra.mxu0 0.0
    %60 = vmatprep.subr.mxu0 0.0
    %61 = vmatpush1.msra.mxu0 0.0
    %62 = vmatprep.subr.mxu0 0.0
    %63 = vmatpush1.msra.mxu0 0.0
    %64 = vmatprep.subr.mxu0 0.0
    %65 = vmatpush1.msra.mxu0 0.0
    %66 = vmatprep.subr.mxu0 0.0
    %67 = vmatpush1.msra.mxu0 0.0
    %68 = vmatprep.subr.mxu0 0.0
    %69 = vmatpush1.msra.mxu0 0.0
    %70 = vmatprep.subr.mxu0 0.0
    %71 = vmatpush1.msra.mxu0 0.0
    %72 = vmatprep.subr.mxu0 0.0
    %73 = vmatpush1.msra.mxu0 0.0
    %74 = vmatprep.subr.mxu0 0.0
    %75 = vmatpush1.msra.mxu0 0.0
    %76 = vmatprep.subr.mxu0 0.0
    %77 = vmatpush1.msra.mxu0 0.0
    %78 = vmatprep.subr.mxu0 0.0
    %79 = vmatpush1.msra.mxu0 0.0
    %80 = vmatprep.subr.mxu0 0.0
    %81 = vmatpush1.msra.mxu0 0.0
    %82 = vmatprep.subr.mxu0 0.0
    %83 = vmatpush1.msra.mxu0 0.0
    %84 = vmatprep.subr.mxu0 0.0
    %85 = vmatpush1.msra.mxu0 0.0
    %86 = vmatprep.subr.mxu0 0.0
    %87 = vmatpush1.msra.mxu0 0.0
    %88 = vmatprep.subr.mxu0 0.0
    %89 = vmatpush1.msra.mxu0 0.0
    %90 = vmatprep.subr.mxu0 0.0
    %91 = vmatpush1.msra.mxu0 0.0
    %92 = vmatprep.subr.mxu0 0.0
    %93 = vmatpush1.msra.mxu0 0.0
    %94 = vmatprep.subr.mxu0 0.0
    %95 = vmatpush1.msra.mxu0 0.0
    %96 = vmatprep.mubr.f32.mxu0 0.0
    %97 = vmatmul.mubr.f32.gmra.mrb[0].mxu0 %v26
    %v98 = vpop.f32.mrb[0].mxu0
    %v99 = vadd.f32 %v23, %v98
    %v100 = vpop.f32.mrb[0].mxu0
    %101 = vdwg.mxu0
    %v102 = vmax.f32 %v99, 0.0
    %v103 = vmin.f32 %v102, 1.0
    %vm104 = vcmask 7168
    %105 = vst.msk [vmem:[#allocation3] sm:$0xff] %vm104, %v103
    // Predicated region
    $region14: #{tpu_custom_call.1} parent=1 // pred_check
      _
    $region15: #{tpu_custom_call.1} parent=1 // pred_check_branch
      %107 = sbr.rel (0) target = $region17
    $region16: #{tpu_custom_call.1} parent=1 // pred_region
      %s109 = ssub.s32 128, 16
      %110 = vsyncadd [#allocation4], %s109
      %s111 = sshll.u32 [#allocation3], 4
      %s112 = int_to_ptr.vmem [resolvable:$true] %s111
      %117 = dma.vmem_to_hbm [thread:$0]  %s112, 16, %s3, [#allocation4], 16, 16, 1
    $region17: #{tpu_custom_call.1} parent=1 // pred_fallthru
      _
    // Predicated region
    $region18: #{tpu_custom_call.1} parent=1 // pred_check
      _
    $region19: #{tpu_custom_call.1} parent=1 // pred_check_branch
      %119 = sbr.rel (0) target = $region21
    $region20: #{tpu_custom_call.1} parent=1 // pred_region
      %120 = dma.done [#allocation4], 128
    $region21: #{tpu_custom_call.1} parent=1 // pred_fallthru
      _
    %121 = vsyncpa [#allocation4], 1

</llo_original>
